<compile_context>
chip_gen: v6e
topology: v6e:2x2x1
jax: 0.10.0
libtpu: 0.0.40
codegen_flags: <defaults>
</compile_context>

<pallas_src>
import jax
import jax.numpy as jnp
from jax import lax
from jax.experimental import pallas as pl
from jax.experimental.pallas import tpu as pltpu

KH = KW = 2      # ConvTranspose2d kernel_size
STRIDE = 2

_LANE = 128
_VMEM_BLOCK_BUDGET = 24 * 1024 * 1024   # target for the double-buffered blocks


def _upsample_matmul_kernel(x_ref, w_ref, b_ref, o_ref):
    """x_ref: (1, Cin, TP) f32, w_ref: (4*Cout, Cin) bf16,
    b_ref: (4*Cout, 1) f32, o_ref: (1, 4*Cout, TP) store_dtype."""
    x = x_ref[0].astype(w_ref.dtype)            # in-kernel cast; hidden under DMA/MXU
    acc = jnp.dot(w_ref[...], x,                # single MXU matmul, f32 accumulate
                  preferred_element_type=jnp.float32)
    o_ref[0] = (acc + b_ref[...]).astype(o_ref.dtype)   # bias add in f32, cast on store


def _pick_pixel_tile(hwp, per_pixel_bytes, fixed_bytes):
    """Largest 128-multiple divisor of hwp whose double-buffered blocks fit the
    VMEM budget; prefers (when >= 1024) a tile whose tile-count is even so the
    v7x megacore split over the leading grid axis is balanced."""
    avail = max(_VMEM_BLOCK_BUDGET - fixed_bytes, per_pixel_bytes * _LANE)
    cap = max(_LANE, (avail // per_pixel_bytes) // _LANE * _LANE)
    cap = min(cap, hwp)
    cands = [c for c in range(_LANE, cap + 1, _LANE) if hwp % c == 0]
    if not cands:
        cands = [_LANE]
    for c in reversed(cands):                    # largest first
        if c >= 1024 and (hwp // c) % 2 == 0:
            return c
    return cands[-1]


def upsample_forward(x_nchw, weight_iokk, bias, *,
                     matmul_dtype=jnp.bfloat16,
                     store_dtype=jnp.bfloat16):
    """Equivalent of _UpSample(in_chan).forward(x).

    x_nchw: (B, Cin, H, W) f32; weight_iokk: (Cin, Cout, 2, 2) (PyTorch
    ConvTranspose2d layout); bias: (Cout,). Returns (B, Cout, 2H, 2W) f32.
    Set matmul_dtype / store_dtype to jnp.float32 for bit-closer parity with
    the f32 PyTorch op (at roughly 2x the HBM traffic).
    """
    B, Cin, H, W = x_nchw.shape
    Cout = weight_iokk.shape[1]
    HW = H * W
    HWp = ((HW + _LANE - 1) // _LANE) * _LANE
    four_cout = Cout * KH * KW

    # NCHW stays put and stays f32: metadata-only reshape, no wrapper cast pass
    # (the bf16 cast happens inside the kernel).
    x = x_nchw.reshape(B, Cin, HW)
    if HWp != HW:
        # Pad the flattened pixel axis to a 128-multiple: unmasked stores and
        # bounded block sizes; the padding is sliced off after the kernel.
        x = jnp.pad(x, ((0, 0), (0, 0), (0, HWp - HW)))

    # Weight rows ordered (co, kh, kw) so the kernel output reshapes directly
    # into (B, Cout, 2, 2, H, W) with no in-kernel relayout.
    w = jnp.transpose(weight_iokk, (1, 2, 3, 0)).reshape(four_cout, Cin)
    w = w.astype(matmul_dtype)
    b = jnp.repeat(bias.astype(jnp.float32), KH * KW).reshape(four_cout, 1)

    # VMEM budget: double-buffered x (f32) and output blocks, plus the small
    # grid-invariant (but still double-buffered) weight/bias blocks.
    x_bytes = x.dtype.itemsize
    store_bytes = jnp.dtype(store_dtype).itemsize
    per_pixel = 2 * (Cin * x_bytes + four_cout * store_bytes)
    fixed = 2 * (w.size * w.dtype.itemsize + b.size * b.dtype.itemsize)
    TP = _pick_pixel_tile(HWp, per_pixel, fixed)
    vmem_need = fixed + TP * per_pixel
    vmem_limit = int(max(32 * 1024 * 1024, vmem_need + 2 * 1024 * 1024))

    grid = (HWp // TP, B)   # pixel tiles first: larger, even-preferred axis
    y = pl.pallas_call(
        _upsample_matmul_kernel,
        out_shape=jax.ShapeDtypeStruct((B, four_cout, HWp), store_dtype),
        grid_spec=pltpu.PrefetchScalarGridSpec(
            num_scalar_prefetch=0,
            grid=grid,
            in_specs=[
                pl.BlockSpec((1, Cin, TP), lambda pp, bb: (bb, 0, pp)),
                pl.BlockSpec((four_cout, Cin), lambda pp, bb: (0, 0)),
                pl.BlockSpec((four_cout, 1), lambda pp, bb: (0, 0)),
            ],
            out_specs=pl.BlockSpec((1, four_cout, TP),
                                   lambda pp, bb: (bb, 0, pp)),
        ),
        # No reduction axis: every grid step is independent -> both axes
        # parallel (shards across the two v7x TensorCores).
        compiler_params=pltpu.CompilerParams(
            dimension_semantics=("parallel", "parallel"),
            vmem_limit_bytes=vmem_limit),
    )(x, w, b)

    if HWp != HW:
        y = y[:, :, :HW]
    # Depth-to-space back to NCHW: the single remaining wrapper pass, fused by
    # XLA with the cast back to f32; with bf16 staging it reads 2B/elem instead
    # of 4B.  (A fully in-kernel depth-to-space needs a co<->spatial relayout
    # plus a lane interleave inside the kernel; kept in XLA for lowering
    # robustness.)
    y = y.reshape(B, Cout, KH, KW, H, W)
    y = jnp.transpose(y, (0, 1, 4, 2, 5, 3)).astype(jnp.float32)
    return y.reshape(B, Cout, H * STRIDE, W * STRIDE)


def _reference(x_nchw, weight_iokk, bias):
    """Pure-JAX f32 reference of ConvTranspose2d(kernel_size=2, stride=2)."""
    B, Cin, H, W = x_nchw.shape
    Cout = weight_iokk.shape[1]
    y = jnp.einsum('bcij,cokl->boikjl', x_nchw, weight_iokk,
                   precision=lax.Precision.HIGHEST)
    y = y.reshape(B, Cout, 2 * H, 2 * W)
    return y + bias[None, :, None, None]


if __name__ == "__main__":
    key = jax.random.PRNGKey(0)
    B, Cin, H, W = 2, 4, 16, 16
    Cout = Cin // 2

    k_x, k_w, k_b = jax.random.split(key, 3)
    x = jax.random.normal(k_x, (B, Cin, H, W), dtype=jnp.float32)

    # PyTorch-style uniform fan-in init for ConvTranspose2d; deterministic.
    bound = 1.0 / jnp.sqrt(jnp.float32(Cin * KH * KW))
    weight = jax.random.uniform(k_w, (Cin, Cout, KH, KW), jnp.float32, -bound, bound)
    bias = jax.random.uniform(k_b, (Cout,), jnp.float32, -bound, bound)

    out = upsample_forward(x, weight, bias)
    out = jax.block_until_ready(out)

    ref = _reference(x, weight, bias)
    assert out.shape == (B, Cout, 2 * H, 2 * W)
    assert out.dtype == jnp.float32
    max_err = float(jnp.max(jnp.abs(out - ref)))
    # bf16 matmul inputs + bf16 output staging (f32 accumulate) vs f32 HIGHEST ref.
    assert jnp.allclose(out, ref, atol=2e-2, rtol=2e-2), max_err

    print("KERNEL_OK")
</pallas_src>

<mosaic_0001>
module attributes {stable_mosaic.version = 11 : i64} {
  func.func @_upsample_matmul_kernel(%arg0: i32, %arg1: i32, %arg2: memref<1x4x256xf32, #tpu.memory_space<vmem>>, %arg3: memref<8x4xbf16, #tpu.memory_space<vmem>>, %arg4: memref<8x1xf32, #tpu.memory_space<vmem>>, %arg5: memref<1x8x256xbf16, #tpu.memory_space<vmem>>) attributes {dimension_semantics = [#tpu.dimension_semantics<parallel>, #tpu.dimension_semantics<parallel>], iteration_bounds = array<i64: 1, 2>, scalar_prefetch = 0 : i64, scratch_operands = 0 : i64, tpu.core_type = #tpu.core_type<tc>, window_params = [{transform_indices = @transform_0, window_bounds = array<i64: 1, 4, 256>}, {pipeline_mode = #tpu.pipeline_mode<synchronous>, transform_indices = @transform_1, window_bounds = array<i64: 8, 4>}, {pipeline_mode = #tpu.pipeline_mode<synchronous>, transform_indices = @transform_2, window_bounds = array<i64: 8, 1>}, {transform_indices = @transform_3, window_bounds = array<i64: 1, 8, 256>}]} {
    %c0 = arith.constant 0 : index
    %c0_0 = arith.constant 0 : index
    %c0_1 = arith.constant 0 : index
    %0 = vector.load %arg2[%c0, %c0_0, %c0_1] : memref<1x4x256xf32, #tpu.memory_space<vmem>>, vector<1x4x256xf32>
    %1 = vector.shape_cast %0 : vector<1x4x256xf32> to vector<4x256xf32>
    %2 = arith.truncf %1 : vector<4x256xf32> to vector<4x256xbf16>
    %c0_2 = arith.constant 0 : index
    %c0_3 = arith.constant 0 : index
    %3 = vector.load %arg3[%c0_2, %c0_3] : memref<8x4xbf16, #tpu.memory_space<vmem>>, vector<8x4xbf16>
    %cst = arith.constant dense<0.000000e+00> : vector<8x256xf32>
    %4 = tpu.matmul %3, %2, %cst {dimension_numbers = #tpu.dot_dimension_numbers<[1], [0], [0], [1], [0, 0, 1, 1], [], []>} : vector<8x4xbf16>, vector<4x256xbf16>, vector<8x256xf32> -> vector<8x256xf32>
    %c0_4 = arith.constant 0 : index
    %c0_5 = arith.constant 0 : index
    %5 = vector.load %arg4[%c0_4, %c0_5] : memref<8x1xf32, #tpu.memory_space<vmem>>, vector<8x1xf32>
    %6 = vector.broadcast %5 : vector<8x1xf32> to vector<8x256xf32>
    %7 = arith.addf %4, %6 : vector<8x256xf32>
    %8 = arith.truncf %7 : vector<8x256xf32> to vector<8x256xbf16>
    %c0_6 = arith.constant 0 : index
    %c0_7 = arith.constant 0 : index
    %c0_8 = arith.constant 0 : index
    %9 = vector.load %arg5[%c0_6, %c0_7, %c0_8] : memref<1x8x256xbf16, #tpu.memory_space<vmem>>, vector<1x8x256xbf16>
    %10 = vector.shape_cast %9 : vector<1x8x256xbf16> to vector<8x256xbf16>
    %11 = vector.shape_cast %8 : vector<8x256xbf16> to vector<1x8x256xbf16>
    tpu.vector_store %arg5[%c0_6, %c0_7, %c0_8], %11 {strides = array<i32>} : memref<1x8x256xbf16, #tpu.memory_space<vmem>>, vector<1x8x256xbf16>,
    return
  }
  func.func @transform_0(%arg0: i32, %arg1: i32) -> (i32, i32, i32) {
    %c0_i32 = arith.constant 0 : i32
    %c0_i32_0 = arith.constant 0 : i32
    return %arg1, %c0_i32, %arg0 : i32, i32, i32
  }
  func.func @transform_1(%arg0: i32, %arg1: i32) -> (i32, i32) {
    %c0_i32 = arith.constant 0 : i32
    %c0_i32_0 = arith.constant 0 : i32
    %c0_i32_1 = arith.constant 0 : i32
    return %c0_i32, %c0_i32_0 : i32, i32
  }
  func.func @transform_2(%arg0: i32, %arg1: i32) -> (i32, i32) {
    %c0_i32 = arith.constant 0 : i32
    %c0_i32_0 = arith.constant 0 : i32
    %c0_i32_1 = arith.constant 0 : i32
    return %c0_i32, %c0_i32_0 : i32, i32
  }
  func.func @transform_3(%arg0: i32, %arg1: i32) -> (i32, i32, i32) {
    %c0_i32 = arith.constant 0 : i32
    %c0_i32_0 = arith.constant 0 : i32
    return %arg1, %c0_i32, %arg0 : i32, i32, i32
  }
}

</mosaic_0001>

<llo_original>
// kernel: tpu_custom_call.1
$region0: #{tpu_custom_call.1}
  #allocation0 [shape = 'u32[]', space=smem, size = 0x4, offset = 0x4, fixed_abs, tag = 'smem constant byte address 0x4 - core index']
  #allocation1 [shape = 'u32[144,128]{1,0:T(1,128)}', space=vmem, size = 0x12000, scoped, tag = 'internal scratch']
  %s0 = inlined_call_operand.hbm [shape: f32[2,4,256], index: 0, kind: input, shape index: {}]
  %s1 = inlined_call_operand.vmem [shape: bf16[8,4], index: 1, kind: input, shape index: {}]
  %s2 = inlined_call_operand.vmem [shape: f32[8,1], index: 2, kind: input, shape index: {}]
  %s3 = inlined_call_operand.hbm [shape: bf16[2,8,256], index: 3, kind: output, shape index: {}]
  %s4 = sld [smem:[#allocation0]]
  $region49: #{tpu_custom_call.1} parent=0
    _
  %s6 = ssub.s32 1, %s4
  %s7 = scalar_select 0, %s6, %s4
  $region1: #{tpu_custom_call.1} parent=0
    #allocation2 [shape = 'u8[8192]{0}', space=vmem, size = 0x2000, scoped, tag = 'input window, operand 0']
    #allocation3 [shape = 's32[2]{0}', space=sflag, size = 0x8, scoped, tag = 'scoped memory for tpu_custom_call.1']
    #allocation4 [shape = 's32[2]{0}', space=sflag, size = 0x8, scoped, tag = 'scoped memory for tpu_custom_call.1']
    #allocation5 [shape = 'u8[8192]{0}', space=vmem, size = 0x2000, scoped, tag = 'output window, operand 0']
    %8 = vsyncpa [#allocation3], 0
    %s9 = scalar_lea.sflag [#allocation3], 1
    %10 = vsyncpa %s9, 0
    %11 = vsyncpa [#allocation4], 0
    %s12 = scalar_lea.sflag [#allocation4], 1
    %13 = vsyncpa %s12, 0
    loop: start=0, step=1, limit=4
    $region2: #{tpu_custom_call.1} parent=1 // loop_pre_header
      _
    $region3: #{tpu_custom_call.1} parent=1 // loop_header
      %s15 = sphi 0, %s19
      %p16 = scmp.ge.s32.totalorder %s15, 4
      %s22 = sphi 0, %s34
      %s23 = sphi 0, %s30
      %s24 = sphi 0, %s22
      %s25 = sphi 0, %s23
      %s26 = sphi 0, %s24
      %s27 = sphi 0, %s25
      %s39 = sphi 0, %s41
      %s42 = sphi 0, %s39
      %s43 = sphi 0, %s42
      %s59 = sphi 0, %s43
      %s63 = sphi 0, %s63
      %s65 = sphi 0, %s63
      %s66 = sphi 0, %s65
      %s80 = sphi 0, %s66
      %s84 = sphi 0, %s84
      %s86 = sphi 0, %s84
      %s87 = sphi 0, %s86
      %s101 = sphi 0, %s87
      %s109 = sphi 0, %s111
      %s112 = sphi 0, %s109
      %s113 = sphi 0, %s112
      %s129 = sphi 0, %s113
    $region4: #{tpu_custom_call.1} parent=1 // loop_header_branch
      %18 = sbr.rel (%p16) target = $region8
    $region5: #{tpu_custom_call.1} parent=1 // loop_body
      %s20 = ssub.s32 %s15, 1
      %s21 = ssub.s32 %s15, 2
      %s28 = sadd.s32 1, %s23
      %p29 = scmp.ge.s32.totalorder %s28, 2
      %s30 = scalar_select %p29, 0, %s28
      %s31 = sadd.s32 1, %s22
      %s32 = scalar_select %p29, %s31, %s22
      %p33 = scmp.ge.s32.totalorder %s32, 1
      %s34 = scalar_select %p33, 0, %s32
      %s35 = ssub.s32 %s23, %s30
      %s36 = ssub.s32 %s22, %s34
      %s37 = sor.u32 %s35, %s36
      %p38 = scmp.eq.s32.totalorder %s37, 0
      %s40 = sadd.s32 %s39, 1
      %s41 = scalar_select %p38, %s39, %s40
      %p44 = pneg %p38
      %p45 = scmp.eq.s32.totalorder %s15, 1
      %p46 = por %p44, %p45
      %p47 = scmp.ne.s32.totalorder %s39, %s42
      %p48 = scmp.eq.s32.totalorder %s15, 0
      %p49 = por %p47, %p48
      %p50 = scmp.ne.s32.totalorder %s39, %s42
      %p51 = scmp.eq.s32.totalorder %s20, 1
      %p52 = por %p50, %p51
      %p53 = scmp.ne.s32.totalorder %s42, %s43
      %p54 = scmp.eq.s32.totalorder %s20, 0
      %p55 = por %p53, %p54
      %p56 = scmp.ne.s32.totalorder %s42, %s43
      %p57 = scmp.eq.s32.totalorder %s21, 1
      %p58 = por %p56, %p57
      %p60 = scmp.ne.s32.totalorder %s43, %s59
      %p61 = scmp.eq.s32.totalorder %s21, 0
      %p62 = por %p60, %p61
      %s64 = sadd.s32 %s63, 1
      %p67 = scmp.eq.s32.totalorder %s15, 1
      %p68 = scmp.ne.s32.totalorder %s63, %s65
      %p69 = scmp.eq.s32.totalorder %s15, 0
      %p70 = por %p68, %p69
      %p71 = scmp.ne.s32.totalorder %s63, %s65
      %p72 = scmp.eq.s32.totalorder %s20, 1
      %p73 = por %p71, %p72
      %p74 = scmp.ne.s32.totalorder %s65, %s66
      %p75 = scmp.eq.s32.totalorder %s20, 0
      %p76 = por %p74, %p75
      %p77 = scmp.ne.s32.totalorder %s65, %s66
      %p78 = scmp.eq.s32.totalorder %s21, 1
      %p79 = por %p77, %p78
      %p81 = scmp.ne.s32.totalorder %s66, %s80
      %p82 = scmp.eq.s32.totalorder %s21, 0
      %p83 = por %p81, %p82
      %s85 = sadd.s32 %s84, 1
      %p88 = scmp.eq.s32.totalorder %s15, 1
      %p89 = scmp.ne.s32.totalorder %s84, %s86
      %p90 = scmp.eq.s32.totalorder %s15, 0
      %p91 = por %p89, %p90
      %p92 = scmp.ne.s32.totalorder %s84, %s86
      %p93 = scmp.eq.s32.totalorder %s20, 1
      %p94 = por %p92, %p93
      %p95 = scmp.ne.s32.totalorder %s86, %s87
      %p96 = scmp.eq.s32.totalorder %s20, 0
      %p97 = por %p95, %p96
      %p98 = scmp.ne.s32.totalorder %s86, %s87
      %p99 = scmp.eq.s32.totalorder %s21, 1
      %p100 = por %p98, %p99
      %p102 = scmp.ne.s32.totalorder %s87, %s101
      %p103 = scmp.eq.s32.totalorder %s21, 0
      %p104 = por %p102, %p103
      %s105 = ssub.s32 %s23, %s30
      %s106 = ssub.s32 %s22, %s34
      %s107 = sor.u32 %s105, %s106
      %p108 = scmp.eq.s32.totalorder %s107, 0
      %s110 = sadd.s32 %s109, 1
      %s111 = scalar_select %p108, %s109, %s110
      %p114 = pneg %p108
      %p115 = scmp.eq.s32.totalorder %s15, 1
      %p116 = por %p114, %p115
      %p117 = scmp.ne.s32.totalorder %s109, %s112
      %p118 = scmp.eq.s32.totalorder %s15, 0
      %p119 = por %p117, %p118
      %p120 = scmp.ne.s32.totalorder %s109, %s112
      %p121 = scmp.eq.s32.totalorder %s20, 1
      %p122 = por %p120, %p121
      %p123 = scmp.ne.s32.totalorder %s112, %s113
      %p124 = scmp.eq.s32.totalorder %s20, 0
      %p125 = por %p123, %p124
      %p126 = scmp.ne.s32.totalorder %s112, %s113
      %p127 = scmp.eq.s32.totalorder %s21, 1
      %p128 = por %p126, %p127
      %p130 = scmp.ne.s32.totalorder %s113, %s129
      %p131 = scmp.eq.s32.totalorder %s21, 0
      %p132 = por %p130, %p131
      %p133 = scmp.le.s32.totalorder 1, %s15
      %p134 = scmp.lt.s32.totalorder %s15, 3
      %p135 = pnand %p133, %p134
      %p136 = pneg %p135
      // Predicated region
      $region9: #{tpu_custom_call.1} parent=5 // pred_check
        _
      $region10: #{tpu_custom_call.1} parent=5 // pred_check_branch
        %138 = sbr.rel (%p135) target = $region12
      $region11: #{tpu_custom_call.1} parent=5 // pred_region
        %s139 = ssub.s32 %s15, 1
        // Predicated region
        $region13: #{tpu_custom_call.1} parent=11 // pred_check
          %p140 = pneg %p76
        $region14: #{tpu_custom_call.1} parent=11 // pred_check_branch
          %142 = sbr.rel (%p140) target = $region16
        $region15: #{tpu_custom_call.1} parent=11 // pred_region
          _
        $region16: #{tpu_custom_call.1} parent=11 // pred_fallthru
          _
        // Predicated region
        $region17: #{tpu_custom_call.1} parent=11 // pred_check
          %p143 = pneg %p97
        $region18: #{tpu_custom_call.1} parent=11 // pred_check_branch
          %145 = sbr.rel (%p143) target = $region20
        $region19: #{tpu_custom_call.1} parent=11 // pred_region
          _
        $region20: #{tpu_custom_call.1} parent=11 // pred_fallthru
          _
      $region12: #{tpu_custom_call.1} parent=5 // pred_fallthru
        _
      %p146 = scmp.lt.s32.totalorder %s15, 2
      // Predicated region
      $region21: #{tpu_custom_call.1} parent=5 // pred_check
        %p147 = pneg %p146
      $region22: #{tpu_custom_call.1} parent=5 // pred_check_branch
        %149 = sbr.rel (%p147) target = $region24
      $region23: #{tpu_custom_call.1} parent=5 // pred_region
        // Predicated region
        $region25: #{tpu_custom_call.1} parent=23 // pred_check
          %p150 = pneg %p49
        $region26: #{tpu_custom_call.1} parent=23 // pred_check_branch
          %152 = sbr.rel (%p150) target = $region28
        $region27: #{tpu_custom_call.1} parent=23 // pred_region
          %s153 = sand.u32 %s39, 1
          %s154 = scalar_lea.sflag [#allocation3], %s153
          %s155 = sand.u32 %s39, 1
          %s156 = smul.addr %s155, 8
          %s157 = scalar_lea.vmem [#allocation2], %s156
          %s158 = smul.u32 2, %s22
          %s160 = ssub.s32 128, 128
          %161 = vsyncadd %s154, %s160
          %s162 = smul.addr %s23, 2
          %s163 = sadd.s32 %s158, %s162
          %s164 = smul.addr %s163, 64
          %s165 = scalar_lea.hbm %s0, %s164
          %s167 = sshll.u32 %s157, 4
          %s168 = int_to_ptr.vmem [resolvable:$true] %s167
          %170 = dma.hbm_to_vmem [thread:$0]  %s165, 128, %s168, %s154
        $region28: #{tpu_custom_call.1} parent=23 // pred_fallthru
          _
      $region24: #{tpu_custom_call.1} parent=5 // pred_fallthru
        _
      %p171 = scmp.le.s32.totalorder 1, %s15
      %p172 = scmp.lt.s32.totalorder %s15, 3
      %p173 = pnand %p171, %p172
      %p174 = pneg %p173
      // Predicated region
      $region29: #{tpu_custom_call.1} parent=5 // pred_check
        _
      $region30: #{tpu_custom_call.1} parent=5 // pred_check_branch
        %176 = sbr.rel (%p173) target = $region32
      $region31: #{tpu_custom_call.1} parent=5 // pred_region
        %s177 = ssub.s32 %s15, 1
        %s178 = sand.u32 %s42, 1
        %s179 = scalar_lea.sflag [#allocation3], %s178
        %s180 = sand.u32 %s42, 1
        %s181 = smul.addr %s180, 8
        %s182 = scalar_lea.vmem [#allocation2], %s181
        // Predicated region
        $region33: #{tpu_custom_call.1} parent=31 // pred_check
          %p183 = pneg %p55
        $region34: #{tpu_custom_call.1} parent=31 // pred_check_branch
          %185 = sbr.rel (%p183) target = $region36
        $region35: #{tpu_custom_call.1} parent=31 // pred_region
          %186 = dma.done %s179, 128
        $region36: #{tpu_custom_call.1} parent=31 // pred_fallthru
          _
        %s187 = sand.u32 %s42, 1
        %s188 = scalar_lea.sflag [#allocation3], %s187
        %s189 = sand.u32 %s42, 1
        %s190 = smul.addr %s189, 8
        %s191 = scalar_lea.vmem [#allocation2], %s190
        %p192 = pneg %p55
        %p193 = pneg %p52
        %p194 = pneg %p76
        %p195 = pneg %p73
        %p196 = pneg %p97
        %p197 = pneg %p94
        %p198 = pneg %p125
        %p199 = pneg %p122
        %s200 = sand.u32 %s112, 1
        %s201 = scalar_lea.sflag [#allocation4], %s200
        %s202 = sand.u32 %s112, 1
        %s203 = smul.addr %s202, 8
        %s204 = scalar_lea.vmem [#allocation5], %s203
        %s205 = smul.u32 2, %s24
        %s206 = smul.u32 2, %s24
        %v208 = vld [vmem:[%s182] sm:$0xff]
        %v210 = vcombine.high %v208, %v208
        %v212 = vpack.c.bf16 %v208, %v208
        %v213 = vpack.c.bf16 %v210, %v210
        %v214 = vld [vmem:[%s1] sm:$0xf]
        %v215 = vld [vmem:[%s2] sm:$0xff]
        %217 = vset.pattern.permute.xlu0 0
        %218 = vperm.xlu0 %217, %v215
        %v219 = vpop.permute.xlu0 %218
        %vm221 = vcmask 31744
        %v223 = vsel %vm221, %v214, 0
        %vm225 = vcmask 1041408
        %v227 = vsel %vm225, %v212, 0
        %v230 = vsel %vm225, %v213, 0
        %232 = vmatprep.subr.bf16.mxu0 0
        %233 = vmatpush1.bf16.msra.mxu0 0
        %234 = vmatprep.subr.bf16.mxu0 0
        %235 = vmatpush1.bf16.msra.mxu0 0
        %236 = vmatprep.subr.bf16.mxu0 0
        %237 = vmatpush1.bf16.msra.mxu0 0
        %238 = vmatprep.subr.bf16.mxu0 0
        %239 = vmatpush1.bf16.msra.mxu0 0
        %240 = vmatprep.subr.bf16.mxu0 0
        %241 = vmatpush1.bf16.msra.mxu0 0
        %242 = vmatprep.subr.bf16.mxu0 0
        %243 = vmatpush1.bf16.msra.mxu0 0
        %244 = vmatprep.subr.bf16.mxu0 0
        %245 = vmatpush1.bf16.msra.mxu0 0
        %246 = vmatprep.subr.bf16.mxu0 %v230
        %247 = vmatpush1.bf16.msra.mxu0 %v227
        %248 = vmatprep.subr.bf16.mxu0 0
        %249 = vmatpush2.bf16.msra.mxu0 0
        %250 = vmatprep.subr.bf16.mxu0 0
        %251 = vmatpush2.bf16.msra.mxu0 0
        %252 = vmatprep.subr.bf16.mxu0 0
        %253 = vmatpush2.bf16.msra.mxu0 0
        %254 = vmatprep.subr.bf16.mxu0 0
        %255 = vmatpush2.bf16.msra.mxu0 0
        %256 = vmatprep.subr.bf16.mxu0 0
        %257 = vmatpush2.bf16.msra.mxu0 0
        %258 = vmatprep.subr.bf16.mxu0 0
        %259 = vmatpush2.bf16.msra.mxu0 0
        %260 = vmatprep.subr.bf16.mxu0 0
        %261 = vmatpush2.bf16.msra.mxu0 0
        %262 = vmatprep.subr.bf16.mxu0 0
        %263 = vmatpush2.bf16.msra.mxu0 0
        %264 = vmatprep.mubr.bf16.mxu0 0
        %265 = vmatmul.mubr.bf16.gmra.mxu0 %v223
        %v266 = vpop.f32.mrf.mxu0
        %v267 = vadd.f32 %v219, %v266
        %v268 = vpop.f32.mrf.mxu0
        %v269 = vadd.f32 %v219, %v268
        %v270 = vpop.f32.mrf.mxu0
        %v271 = vpop.f32.mrf.mxu0
        %272 = vdwg.mxu0
        %v273 = vpack.c.bf16 %v267, %v267
        %v274 = vpack.c.bf16 %v269, %v269
        %v277 = vunpack.c.l.b16 %v273
        %v278 = vunpack.c.l.b16 %v274
        %v279 = vpack.c.b16 %v278, %v277
        %281 = vst [vmem:[%s204] sm:$0xff] %v279
        %s282 = sand.u32 %s112, 1
        %s283 = scalar_lea.sflag [#allocation4], %s282
        %s284 = sand.u32 %s112, 1
        %s285 = smul.addr %s284, 8
        %s286 = scalar_lea.vmem [#allocation5], %s285
        // Predicated region
        $region37: #{tpu_custom_call.1} parent=31 // pred_check
          %p287 = pneg %p122
        $region38: #{tpu_custom_call.1} parent=31 // pred_check_branch
          %289 = sbr.rel (%p287) target = $region40
        $region39: #{tpu_custom_call.1} parent=31 // pred_region
          %s290 = smul.u32 2, %s24
          %s292 = ssub.s32 128, 128
          %293 = vsyncadd %s283, %s292
          %s294 = smul.addr %s25, 2
          %s295 = sadd.s32 %s290, %s294
          %s296 = smul.addr %s295, 64
          %s297 = scalar_lea.hbm %s3, %s296
          %s299 = sshll.u32 %s286, 4
          %s300 = int_to_ptr.vmem [resolvable:$true] %s299
          %302 = dma.vmem_to_hbm [thread:$0]  %s300, 128, %s297, %s283
        $region40: #{tpu_custom_call.1} parent=31 // pred_fallthru
          _
      $region32: #{tpu_custom_call.1} parent=5 // pred_fallthru
        _
      %p303 = scmp.le.s32.totalorder 2, %s15
      // Predicated region
      $region41: #{tpu_custom_call.1} parent=5 // pred_check
        %p304 = pneg %p303
      $region42: #{tpu_custom_call.1} parent=5 // pred_check_branch
        %306 = sbr.rel (%p304) target = $region44
      $region43: #{tpu_custom_call.1} parent=5 // pred_region
        %s307 = ssub.s32 %s15, 2
        // Predicated region
        $region45: #{tpu_custom_call.1} parent=43 // pred_check
          %p308 = pneg %p128
        $region46: #{tpu_custom_call.1} parent=43 // pred_check_branch
          %310 = sbr.rel (%p308) target = $region48
        $region47: #{tpu_custom_call.1} parent=43 // pred_region
          %s311 = sand.u32 %s113, 1
          %s312 = scalar_lea.sflag [#allocation4], %s311
          %s313 = sand.u32 %s113, 1
          %s314 = smul.addr %s313, 8
          %s315 = scalar_lea.vmem [#allocation5], %s314
          %316 = dma.done %s312, 128
        $region48: #{tpu_custom_call.1} parent=43 // pred_fallthru
          _
      $region44: #{tpu_custom_call.1} parent=5 // pred_fallthru
        _
    $region6: #{tpu_custom_call.1} parent=1 // loop_footer
      %s19 = sadd.s32 1, %s15
    $region7: #{tpu_custom_call.1} parent=1 // loop_footer_branch
      %14 = sbr.rel target = $region3
    $region8: #{tpu_custom_call.1} parent=1 // loop_exit
      _
    %317 = vsyncpa [#allocation3], 1
    %s318 = scalar_lea.sflag [#allocation3], 1
    %319 = vsyncpa %s318, 1
    %320 = vsyncpa [#allocation4], 1
    %s321 = scalar_lea.sflag [#allocation4], 1
    %322 = vsyncpa %s321, 1

</llo_original>
